<compile_context>
chip_gen: v5e
topology: v5e:2x2
jax: 0.10.0
libtpu: 0.0.40
codegen_flags: <defaults>
</compile_context>

<pallas_src>
import functools

import jax
import jax.numpy as jnp
from jax.experimental import pallas as pl
from jax.experimental.pallas import tpu as pltpu


def _cross_attention_kernel(x_ref, enc_ref, wq_ref, wk_ref, wv_ref, wo_ref, bo_ref,
                            out_ref, *, heads, dim_head, mxu_dtype):
    """One (batch, q-block) per grid point; all heads fused in-body."""
    f32 = jnp.float32
    x = x_ref[0]        # (Tq,  Dq)   mxu_dtype (scale already folded into Wq)
    enc = enc_ref[0]    # (Skv, Dc)   mxu_dtype

    # Full-width projections: one wide MXU matmul each, f32 accumulation.
    q = jnp.dot(x, wq_ref[...], preferred_element_type=f32)     # (Tq,  H*dh)
    k = jnp.dot(enc, wk_ref[...], preferred_element_type=f32)   # (Skv, H*dh)
    v = jnp.dot(enc, wv_ref[...], preferred_element_type=f32)   # (Skv, H*dh)

    tq = q.shape[0]
    skv = k.shape[0]

    # Cast to the MXU dtype *before* the head-major relayout (half the bytes moved).
    qh = q.astype(mxu_dtype).reshape(tq, heads, dim_head).transpose(1, 0, 2)   # (H, Tq,  dh)
    kh = k.astype(mxu_dtype).reshape(skv, heads, dim_head).transpose(1, 0, 2)  # (H, Skv, dh)
    vh = v.astype(mxu_dtype).reshape(skv, heads, dim_head).transpose(1, 0, 2)  # (H, Skv, dh)

    # scores[h, q, k] (scale pre-folded into Wq); leading-batch einsum -> MXU.
    scores = jnp.einsum('hqd,hkd->hqk', qh, kh, preferred_element_type=f32)

    # Numerically stable softmax in f32; reciprocal goes to the EUP slot.
    scores = scores - jnp.max(scores, axis=-1, keepdims=True)
    e = jnp.exp(scores)
    probs = e * pl.reciprocal(jnp.sum(e, axis=-1, keepdims=True), approx=True)

    # Per-head context: (H, Tq, dh), f32 accumulation.
    o = jnp.einsum('hqk,hkd->hqd', probs.astype(mxu_dtype), vh,
                   preferred_element_type=f32)

    # Output projection without an output-side transpose: Wo is (H, dh, Dq);
    # per-head matmul then sum over heads (cheap elementwise VPU adds).
    out = jnp.einsum('hqd,hdo->hqo', o.astype(mxu_dtype), wo_ref[...],
                     preferred_element_type=f32).sum(axis=0)    # (Tq, Dq)

    # to_out[0] bias; dropout (to_out[1]) is identity at inference.
    out_ref[0] = (out + bo_ref[...]).astype(out_ref.dtype)


def cross_attention_pallas(hidden_states, encoder_hidden_states,
                           wq, wk, wv, wo, bo, *, heads, dim_head,
                           block_q=512, mxu_dtype=jnp.bfloat16):
    """
    hidden_states:         (B, Sq,  Dq)   float32
    encoder_hidden_states: (B, Skv, Dc)   float32 (pass hidden_states for self-attn)
    wq: (Dq, H*dh)   wk, wv: (Dc, H*dh)   wo: (H*dh, Dq)   bo: (Dq,)
    mxu_dtype: bf16 by default (MXU operands); accumulation/softmax stay float32.
    returns (B, Sq, Dq)
    """
    B, Sq, Dq = hidden_states.shape
    _, Skv, Dc = encoder_hidden_states.shape
    Hdh = heads * dim_head
    scale = dim_head ** -0.5

    block_q = min(block_q, Sq)
    if Sq % block_q != 0:
        block_q = Sq  # TODO(synk): ragged Sq via padded partial q blocks

    # Wrapper-side precision / layout plumbing (free relative to per-grid-step work):
    #   * bf16 operands halve HBM traffic and resident VMEM for weights & activations.
    #   * softmax scale folded into Wq.
    #   * Wo reshaped head-major (H, dh, Dq) so the kernel needs no output transpose.
    x_c = hidden_states.astype(mxu_dtype)
    enc_c = encoder_hidden_states.astype(mxu_dtype)
    wq_c = (wq * scale).astype(mxu_dtype)
    wk_c = wk.astype(mxu_dtype)
    wv_c = wv.astype(mxu_dtype)
    wo_c = wo.reshape(heads, dim_head, Dq).astype(mxu_dtype)
    bo_c = bo.reshape(1, Dq).astype(jnp.float32)

    kernel = functools.partial(_cross_attention_kernel, heads=heads,
                               dim_head=dim_head, mxu_dtype=mxu_dtype)

    out = pl.pallas_call(
        kernel,
        out_shape=jax.ShapeDtypeStruct((B, Sq, Dq), hidden_states.dtype),
        grid_spec=pltpu.PrefetchScalarGridSpec(
            num_scalar_prefetch=0,
            grid=(B, Sq // block_q),                               # both parallel
            in_specs=[
                pl.BlockSpec((1, block_q, Dq), lambda b, qb: (b, qb, 0)),  # hidden
                pl.BlockSpec((1, Skv, Dc), lambda b, qb: (b, 0, 0)),       # encoder
                pl.BlockSpec((Dq, Hdh), lambda b, qb: (0, 0)),             # Wq*scale
                pl.BlockSpec((Dc, Hdh), lambda b, qb: (0, 0)),             # Wk
                pl.BlockSpec((Dc, Hdh), lambda b, qb: (0, 0)),             # Wv
                pl.BlockSpec((heads, dim_head, Dq), lambda b, qb: (0, 0, 0)),  # Wo (H,dh,Dq)
                pl.BlockSpec((1, Dq), lambda b, qb: (0, 0)),               # bias
            ],
            out_specs=pl.BlockSpec((1, block_q, Dq), lambda b, qb: (b, qb, 0)),
        ),
        compiler_params=pltpu.CompilerParams(
            dimension_semantics=("parallel", "parallel"),
            vmem_limit_bytes=64 * 1024 * 1024,   # sized against v7x's 64 MiB VMEM
        ),
    )(x_c, enc_c, wq_c, wk_c, wv_c, wo_c, bo_c)
    return out


def cross_attention_ref(hidden_states, encoder_hidden_states, wq, wk, wv, wo, bo,
                        *, heads, dim_head):
    """Pure-JAX f32 reference mirroring the PyTorch forward semantics."""
    B, Sq, Dq = hidden_states.shape
    Skv = encoder_hidden_states.shape[1]
    scale = dim_head ** -0.5
    q = hidden_states @ wq
    k = encoder_hidden_states @ wk
    v = encoder_hidden_states @ wv
    qh = q.reshape(B, Sq, heads, dim_head).transpose(0, 2, 1, 3)
    kh = k.reshape(B, Skv, heads, dim_head).transpose(0, 2, 1, 3)
    vh = v.reshape(B, Skv, heads, dim_head).transpose(0, 2, 1, 3)
    scores = scale * jnp.einsum("bhqd,bhkd->bhqk", qh, kh)
    probs = jax.nn.softmax(scores, axis=-1)
    oh = jnp.einsum("bhqk,bhkd->bhqd", probs, vh)
    o = oh.transpose(0, 2, 1, 3).reshape(B, Sq, heads * dim_head)
    return o @ wo + bo


if __name__ == "__main__":
    # Module config (small but representative):
    query_dim = 32
    cross_attention_dim = 32
    heads = 4
    dim_head = 16
    inner_dim = heads * dim_head  # 64

    # Input shapes
    B, Sq, Skv = 2, 16, 8

    key = jax.random.PRNGKey(0)
    ks = jax.random.split(key, 7)
    hidden_states = jax.random.normal(ks[0], (B, Sq, query_dim), jnp.float32)
    encoder_hidden_states = jax.random.normal(ks[1], (B, Skv, cross_attention_dim),
                                              jnp.float32)

    # Deterministic synthetic parameters (to_q/k/v bias=False, to_out[0] has bias).
    # Stored as (in_features, out_features) so x @ W matches PyTorch's x @ W.T.
    wq = 0.1 * jax.random.normal(ks[2], (query_dim, inner_dim), jnp.float32)
    wk = 0.1 * jax.random.normal(ks[3], (cross_attention_dim, inner_dim), jnp.float32)
    wv = 0.1 * jax.random.normal(ks[4], (cross_attention_dim, inner_dim), jnp.float32)
    wo = 0.1 * jax.random.normal(ks[5], (inner_dim, query_dim), jnp.float32)
    bo = 0.1 * jax.random.normal(ks[6], (query_dim,), jnp.float32)

    out = cross_attention_pallas(hidden_states, encoder_hidden_states,
                                 wq, wk, wv, wo, bo,
                                 heads=heads, dim_head=dim_head)
    out = jax.block_until_ready(out)

    ref = cross_attention_ref(hidden_states, encoder_hidden_states,
                              wq, wk, wv, wo, bo,
                              heads=heads, dim_head=dim_head)

    assert out.shape == (B, Sq, query_dim)
    # bf16 MXU operands with f32 accumulation -> validate with a bf16-appropriate
    # tolerance against the pure-f32 reference.
    assert jnp.allclose(out, ref, atol=2.5e-2, rtol=2.5e-2), (
        f"max abs err = {jnp.max(jnp.abs(out - ref))}")
    print("KERNEL_OK")
</pallas_src>

<mosaic_0001>
module attributes {stable_mosaic.version = 11 : i64} {
  func.func @_cross_attention_kernel(%arg0: i32, %arg1: i32, %arg2: memref<1x16x32xbf16, #tpu.memory_space<vmem>>, %arg3: memref<1x8x32xbf16, #tpu.memory_space<vmem>>, %arg4: memref<32x64xbf16, #tpu.memory_space<vmem>>, %arg5: memref<32x64xbf16, #tpu.memory_space<vmem>>, %arg6: memref<32x64xbf16, #tpu.memory_space<vmem>>, %arg7: memref<4x16x32xbf16, #tpu.memory_space<vmem>>, %arg8: memref<1x32xf32, #tpu.memory_space<vmem>>, %arg9: memref<1x16x32xf32, #tpu.memory_space<vmem>>) attributes {dimension_semantics = [#tpu.dimension_semantics<parallel>, #tpu.dimension_semantics<parallel>], iteration_bounds = array<i64: 2, 1>, scalar_prefetch = 0 : i64, scratch_operands = 0 : i64, tpu.core_type = #tpu.core_type<tc>, window_params = [{transform_indices = @transform_0, window_bounds = array<i64: 1, 16, 32>}, {transform_indices = @transform_1, window_bounds = array<i64: 1, 8, 32>}, {pipeline_mode = #tpu.pipeline_mode<synchronous>, transform_indices = @transform_2, window_bounds = array<i64: 32, 64>}, {pipeline_mode = #tpu.pipeline_mode<synchronous>, transform_indices = @transform_3, window_bounds = array<i64: 32, 64>}, {pipeline_mode = #tpu.pipeline_mode<synchronous>, transform_indices = @transform_4, window_bounds = array<i64: 32, 64>}, {pipeline_mode = #tpu.pipeline_mode<synchronous>, transform_indices = @transform_5, window_bounds = array<i64: 4, 16, 32>}, {pipeline_mode = #tpu.pipeline_mode<synchronous>, transform_indices = @transform_6, window_bounds = array<i64: 1, 32>}, {transform_indices = @transform_7, window_bounds = array<i64: 1, 16, 32>}]} {
    %c0 = arith.constant 0 : index
    %c0_0 = arith.constant 0 : index
    %c0_1 = arith.constant 0 : index
    %0 = vector.load %arg2[%c0, %c0_0, %c0_1] : memref<1x16x32xbf16, #tpu.memory_space<vmem>>, vector<1x16x32xbf16>
    %1 = vector.shape_cast %0 : vector<1x16x32xbf16> to vector<16x32xbf16>
    %c0_2 = arith.constant 0 : index
    %c0_3 = arith.constant 0 : index
    %c0_4 = arith.constant 0 : index
    %2 = vector.load %arg3[%c0_2, %c0_3, %c0_4] : memref<1x8x32xbf16, #tpu.memory_space<vmem>>, vector<1x8x32xbf16>
    %3 = vector.shape_cast %2 : vector<1x8x32xbf16> to vector<8x32xbf16>
    %c0_5 = arith.constant 0 : index
    %c0_6 = arith.constant 0 : index
    %4 = vector.load %arg4[%c0_5, %c0_6] : memref<32x64xbf16, #tpu.memory_space<vmem>>, vector<32x64xbf16>
    %cst = arith.constant dense<0.000000e+00> : vector<16x64xf32>
    %5 = tpu.matmul %1, %4, %cst {dimension_numbers = #tpu.dot_dimension_numbers<[1], [0], [0], [1], [0, 0, 1, 1], [], []>} : vector<16x32xbf16>, vector<32x64xbf16>, vector<16x64xf32> -> vector<16x64xf32>
    %c0_7 = arith.constant 0 : index
    %c0_8 = arith.constant 0 : index
    %6 = vector.load %arg5[%c0_7, %c0_8] : memref<32x64xbf16, #tpu.memory_space<vmem>>, vector<32x64xbf16>
    %cst_9 = arith.constant dense<0.000000e+00> : vector<8x64xf32>
    %7 = tpu.matmul %3, %6, %cst_9 {dimension_numbers = #tpu.dot_dimension_numbers<[1], [0], [0], [1], [0, 0, 1, 1], [], []>} : vector<8x32xbf16>, vector<32x64xbf16>, vector<8x64xf32> -> vector<8x64xf32>
    %c0_10 = arith.constant 0 : index
    %c0_11 = arith.constant 0 : index
    %8 = vector.load %arg6[%c0_10, %c0_11] : memref<32x64xbf16, #tpu.memory_space<vmem>>, vector<32x64xbf16>
    %cst_12 = arith.constant dense<0.000000e+00> : vector<8x64xf32>
    %9 = tpu.matmul %3, %8, %cst_12 {dimension_numbers = #tpu.dot_dimension_numbers<[1], [0], [0], [1], [0, 0, 1, 1], [], []>} : vector<8x32xbf16>, vector<32x64xbf16>, vector<8x64xf32> -> vector<8x64xf32>
    %10 = arith.truncf %5 : vector<16x64xf32> to vector<16x64xbf16>
    %11 = vector.shape_cast %10 : vector<16x64xbf16> to vector<16x4x16xbf16>
    %12 = tpu.transpose %11, [1, 0, 2] : vector<16x4x16xbf16> -> vector<4x16x16xbf16>
    %13 = arith.truncf %7 : vector<8x64xf32> to vector<8x64xbf16>
    %14 = vector.shape_cast %13 : vector<8x64xbf16> to vector<8x4x16xbf16>
    %15 = tpu.transpose %14, [1, 0, 2] : vector<8x4x16xbf16> -> vector<4x8x16xbf16>
    %16 = arith.truncf %9 : vector<8x64xf32> to vector<8x64xbf16>
    %17 = vector.shape_cast %16 : vector<8x64xbf16> to vector<8x4x16xbf16>
    %18 = tpu.transpose %17, [1, 0, 2] : vector<8x4x16xbf16> -> vector<4x8x16xbf16>
    "tpu.trace_start"() <{level = 10 : i32, message = "hqd,hkd->hqk"}> : () -> ()
    %cst_13 = arith.constant dense<0.000000e+00> : vector<4x16x8xf32>
    %19 = tpu.matmul %12, %15, %cst_13 {dimension_numbers = #tpu.dot_dimension_numbers<[2], [2], [1], [1], [0, 0, 0, 1, 1, 1], [0], [0]>} : vector<4x16x16xbf16>, vector<4x8x16xbf16>, vector<4x16x8xf32> -> vector<4x16x8xf32>
    "tpu.trace_stop"() : () -> ()
    %cst_14 = arith.constant dense<0xFF800000> : vector<4x16xf32>
    %20 = vector.multi_reduction <maximumf>, %19, %cst_14 [2] : vector<4x16x8xf32> to vector<4x16xf32>
    %21 = vector.shape_cast %20 : vector<4x16xf32> to vector<4x16x1xf32>
    %22 = vector.broadcast %21 : vector<4x16x1xf32> to vector<4x16x8xf32>
    %23 = arith.subf %19, %22 : vector<4x16x8xf32>
    %24 = math.exp %23 : vector<4x16x8xf32>
    %cst_15 = arith.constant dense<0.000000e+00> : vector<4x16xf32>
    %25 = vector.multi_reduction <add>, %24, %cst_15 [2] : vector<4x16x8xf32> to vector<4x16xf32>
    %26 = vector.shape_cast %25 : vector<4x16xf32> to vector<4x16x1xf32>
    %27 = tpu.reciprocal %26 {approx = true} : vector<4x16x1xf32> -> vector<4x16x1xf32>
    %28 = vector.broadcast %27 : vector<4x16x1xf32> to vector<4x16x8xf32>
    %29 = arith.mulf %24, %28 : vector<4x16x8xf32>
    %30 = arith.truncf %29 : vector<4x16x8xf32> to vector<4x16x8xbf16>
    "tpu.trace_start"() <{level = 10 : i32, message = "hqk,hkd->hqd"}> : () -> ()
    %cst_16 = arith.constant dense<0.000000e+00> : vector<4x16x16xf32>
    %31 = tpu.matmul %30, %18, %cst_16 {dimension_numbers = #tpu.dot_dimension_numbers<[2], [1], [1], [2], [0, 0, 0, 1, 1, 2], [0], [0]>} : vector<4x16x8xbf16>, vector<4x8x16xbf16>, vector<4x16x16xf32> -> vector<4x16x16xf32>
    "tpu.trace_stop"() : () -> ()
    %32 = arith.truncf %31 : vector<4x16x16xf32> to vector<4x16x16xbf16>
    %c0_17 = arith.constant 0 : index
    %c0_18 = arith.constant 0 : index
    %c0_19 = arith.constant 0 : index
    %33 = vector.load %arg7[%c0_17, %c0_18, %c0_19] : memref<4x16x32xbf16, #tpu.memory_space<vmem>>, vector<4x16x32xbf16>
    "tpu.trace_start"() <{level = 10 : i32, message = "hqd,hdo->hqo"}> : () -> ()
    %cst_20 = arith.constant dense<0.000000e+00> : vector<4x16x32xf32>
    %34 = tpu.matmul %32, %33, %cst_20 {dimension_numbers = #tpu.dot_dimension_numbers<[2], [1], [1], [2], [0, 0, 0, 1, 1, 2], [0], [0]>} : vector<4x16x16xbf16>, vector<4x16x32xbf16>, vector<4x16x32xf32> -> vector<4x16x32xf32>
    "tpu.trace_stop"() : () -> ()
    %cst_21 = arith.constant dense<0.000000e+00> : vector<16x32xf32>
    %35 = vector.multi_reduction <add>, %34, %cst_21 [0] : vector<4x16x32xf32> to vector<16x32xf32>
    %c0_22 = arith.constant 0 : index
    %c0_23 = arith.constant 0 : index
    %36 = vector.load %arg8[%c0_22, %c0_23] : memref<1x32xf32, #tpu.memory_space<vmem>>, vector<1x32xf32>
    %37 = vector.broadcast %36 : vector<1x32xf32> to vector<16x32xf32>
    %38 = arith.addf %35, %37 : vector<16x32xf32>
    %c0_24 = arith.constant 0 : index
    %c0_25 = arith.constant 0 : index
    %c0_26 = arith.constant 0 : index
    %39 = vector.load %arg9[%c0_24, %c0_25, %c0_26] : memref<1x16x32xf32, #tpu.memory_space<vmem>>, vector<1x16x32xf32>
    %40 = vector.shape_cast %39 : vector<1x16x32xf32> to vector<16x32xf32>
    %41 = vector.shape_cast %38 : vector<16x32xf32> to vector<1x16x32xf32>
    tpu.vector_store %arg9[%c0_24, %c0_25, %c0_26], %41 {strides = array<i32>} : memref<1x16x32xf32, #tpu.memory_space<vmem>>, vector<1x16x32xf32>,
    return
  }
  func.func @transform_0(%arg0: i32, %arg1: i32) -> (i32, i32, i32) {
    %c0_i32 = arith.constant 0 : i32
    %c0_i32_0 = arith.constant 0 : i32
    return %arg0, %arg1, %c0_i32 : i32, i32, i32
  }
  func.func @transform_1(%arg0: i32, %arg1: i32) -> (i32, i32, i32) {
    %c0_i32 = arith.constant 0 : i32
    %c0_i32_0 = arith.constant 0 : i32
    %c0_i32_1 = arith.constant 0 : i32
    return %arg0, %c0_i32, %c0_i32_0 : i32, i32, i32
  }
  func.func @transform_2(%arg0: i32, %arg1: i32) -> (i32, i32) {
    %c0_i32 = arith.constant 0 : i32
    %c0_i32_0 = arith.constant 0 : i32
    %c0_i32_1 = arith.constant 0 : i32
    return %c0_i32, %c0_i32_0 : i32, i32
  }
  func.func @transform_3(%arg0: i32, %arg1: i32) -> (i32, i32) {
    %c0_i32 = arith.constant 0 : i32
    %c0_i32_0 = arith.constant 0 : i32
    %c0_i32_1 = arith.constant 0 : i32
    return %c0_i32, %c0_i32_0 : i32, i32
  }
  func.func @transform_4(%arg0: i32, %arg1: i32) -> (i32, i32) {
    %c0_i32 = arith.constant 0 : i32
    %c0_i32_0 = arith.constant 0 : i32
    %c0_i32_1 = arith.constant 0 : i32
    return %c0_i32, %c0_i32_0 : i32, i32
  }
  func.func @transform_5(%arg0: i32, %arg1: i32) -> (i32, i32, i32) {
    %c0_i32 = arith.constant 0 : i32
    %c0_i32_0 = arith.constant 0 : i32
    %c0_i32_1 = arith.constant 0 : i32
    %c0_i32_2 = arith.constant 0 : i32
    return %c0_i32, %c0_i32_0, %c0_i32_1 : i32, i32, i32
  }
  func.func @transform_6(%arg0: i32, %arg1: i32) -> (i32, i32) {
    %c0_i32 = arith.constant 0 : i32
    %c0_i32_0 = arith.constant 0 : i32
    %c0_i32_1 = arith.constant 0 : i32
    return %c0_i32, %c0_i32_0 : i32, i32
  }
  func.func @transform_7(%arg0: i32, %arg1: i32) -> (i32, i32, i32) {
    %c0_i32 = arith.constant 0 : i32
    %c0_i32_0 = arith.constant 0 : i32
    return %arg0, %arg1, %c0_i32 : i32, i32, i32
  }
}

</mosaic_0001>

<llo_original>
// kernel: tpu_custom_call.1
$region0: #{tpu_custom_call.1}
  #allocation0 [shape = 'u32[]', space=smem, size = 0x4, offset = 0x4, fixed_abs, tag = 'smem constant byte address 0x4 - core index']
  #allocation1 [shape = 'u32[72,128]{1,0:T(1,128)}', space=vmem, size = 0x9000, scoped, tag = 'internal scratch']
  %s0 = inlined_call_operand.hbm [shape: bf16[2,16,32], index: 0, kind: input, shape index: {}]
  %s1 = inlined_call_operand.hbm [shape: bf16[2,8,32], index: 1, kind: input, shape index: {}]
  %s2 = inlined_call_operand.hbm [shape: bf16[32,64], index: 2, kind: input, shape index: {}]
  %s3 = inlined_call_operand.hbm [shape: bf16[32,64], index: 3, kind: input, shape index: {}]
  %s4 = inlined_call_operand.hbm [shape: bf16[32,64], index: 4, kind: input, shape index: {}]
  %s5 = inlined_call_operand.hbm [shape: bf16[4,16,32], index: 5, kind: input, shape index: {}]
  %s6 = inlined_call_operand.vmem [shape: f32[1,32], index: 6, kind: input, shape index: {}]
  %s7 = inlined_call_operand.hbm [shape: f32[2,16,32], index: 7, kind: output, shape index: {}]
  %s8 = sld [smem:[#allocation0]]
  $region85: #{tpu_custom_call.1} parent=0
    _
  %s10 = ssub.s32 1, %s8
  %s11 = scalar_select 0, %s10, %s8
  $region1: #{tpu_custom_call.1} parent=0
    #allocation2 [shape = 'u8[8192]{0}', space=vmem, size = 0x2000, scoped, tag = 'input window, operand 0']
    #allocation3 [shape = 's32[2]{0}', space=sflag, size = 0x8, scoped, tag = 'scoped memory for tpu_custom_call.1']
    #allocation4 [shape = 's32[2]{0}', space=sflag, size = 0x8, scoped, tag = 'scoped memory for tpu_custom_call.1']
    #allocation5 [shape = 'u8[4096]{0}', space=vmem, size = 0x1000, scoped, tag = 'input window, operand 1']
    #allocation6 [shape = 's32[2]{0}', space=sflag, size = 0x8, scoped, tag = 'scoped memory for tpu_custom_call.1']
    #allocation7 [shape = 'u8[8192]{0}', space=vmem, size = 0x2000, scoped, tag = 'input window, operand 2, single buffered']
    #allocation8 [shape = 'u8[8192]{0}', space=vmem, size = 0x2000, scoped, tag = 'input window, operand 3, single buffered']
    #allocation9 [shape = 's32[1]{0}', space=sflag, size = 0x4, scoped, tag = 'scoped memory for tpu_custom_call.1']
    #allocation10 [shape = 'u8[8192]{0}', space=vmem, size = 0x2000, scoped, tag = 'input window, operand 4, single buffered']
    #allocation11 [shape = 'u8[16384]{0}', space=vmem, size = 0x4000, scoped, tag = 'input window, operand 5, single buffered']
    #allocation12 [shape = 's32[1]{0}', space=sflag, size = 0x4, scoped, tag = 'scoped memory for tpu_custom_call.1']
    #allocation13 [shape = 'u8[16384]{0}', space=vmem, size = 0x4000, scoped, tag = 'output window, operand 0']
    %12 = vsyncpa [#allocation3], 0
    %s13 = scalar_lea.sflag [#allocation3], 1
    %14 = vsyncpa %s13, 0
    %15 = vsyncpa [#allocation6], 0
    %s16 = scalar_lea.sflag [#allocation6], 1
    %17 = vsyncpa %s16, 0
    %18 = vsyncpa [#allocation9], 0
    %19 = vsyncpa [#allocation12], 0
    %20 = vsyncpa [#allocation4], 0
    %s21 = scalar_lea.sflag [#allocation4], 1
    %22 = vsyncpa %s21, 0
    loop: start=0, step=1, limit=4
    $region2: #{tpu_custom_call.1} parent=1 // loop_pre_header
      _
    $region3: #{tpu_custom_call.1} parent=1 // loop_header
      %s24 = sphi 0, %s28
      %p25 = scmp.ge.s32.totalorder %s24, 4
      %s31 = sphi 0, %s43
      %s32 = sphi 0, %s39
      %s33 = sphi 0, %s31
      %s34 = sphi 0, %s32
      %s35 = sphi 0, %s33
      %s36 = sphi 0, %s34
      %s48 = sphi 0, %s50
      %s51 = sphi 0, %s48
      %s52 = sphi 0, %s51
      %s68 = sphi 0, %s52
      %s74 = sphi 0, %s76
      %s77 = sphi 0, %s74
      %s78 = sphi 0, %s77
      %s94 = sphi 0, %s78
      %s98 = sphi 0, %s98
      %s100 = sphi 0, %s98
      %s101 = sphi 0, %s100
      %s115 = sphi 0, %s101
      %s119 = sphi 0, %s119
      %s121 = sphi 0, %s119
      %s122 = sphi 0, %s121
      %s136 = sphi 0, %s122
      %s140 = sphi 0, %s140
      %s142 = sphi 0, %s140
      %s143 = sphi 0, %s142
      %s157 = sphi 0, %s143
      %s161 = sphi 0, %s161
      %s163 = sphi 0, %s161
      %s164 = sphi 0, %s163
      %s178 = sphi 0, %s164
      %s182 = sphi 0, %s182
      %s184 = sphi 0, %s182
      %s185 = sphi 0, %s184
      %s199 = sphi 0, %s185
      %s207 = sphi 0, %s209
      %s210 = sphi 0, %s207
      %s211 = sphi 0, %s210
      %s227 = sphi 0, %s211
    $region4: #{tpu_custom_call.1} parent=1 // loop_header_branch
      %27 = sbr.rel (%p25) target = $region8
    $region5: #{tpu_custom_call.1} parent=1 // loop_body
      %s29 = ssub.s32 %s24, 1
      %s30 = ssub.s32 %s24, 2
      %s37 = sadd.s32 1, %s32
      %p38 = scmp.ge.s32.totalorder %s37, 1
      %s39 = scalar_select %p38, 0, %s37
      %s40 = sadd.s32 1, %s31
      %s41 = scalar_select %p38, %s40, %s31
      %p42 = scmp.ge.s32.totalorder %s41, 2
      %s43 = scalar_select %p42, 0, %s41
      %s44 = ssub.s32 %s31, %s43
      %s45 = ssub.s32 %s32, %s39
      %s46 = sor.u32 %s44, %s45
      %p47 = scmp.eq.s32.totalorder %s46, 0
      %s49 = sadd.s32 %s48, 1
      %s50 = scalar_select %p47, %s48, %s49
      %p53 = pneg %p47
      %p54 = scmp.eq.s32.totalorder %s24, 1
      %p55 = por %p53, %p54
      %p56 = scmp.ne.s32.totalorder %s48, %s51
      %p57 = scmp.eq.s32.totalorder %s24, 0
      %p58 = por %p56, %p57
      %p59 = scmp.ne.s32.totalorder %s48, %s51
      %p60 = scmp.eq.s32.totalorder %s29, 1
      %p61 = por %p59, %p60
      %p62 = scmp.ne.s32.totalorder %s51, %s52
      %p63 = scmp.eq.s32.totalorder %s29, 0
      %p64 = por %p62, %p63
      %p65 = scmp.ne.s32.totalorder %s51, %s52
      %p66 = scmp.eq.s32.totalorder %s30, 1
      %p67 = por %p65, %p66
      %p69 = scmp.ne.s32.totalorder %s52, %s68
      %p70 = scmp.eq.s32.totalorder %s30, 0
      %p71 = por %p69, %p70
      %s72 = ssub.s32 %s31, %s43
      %p73 = scmp.eq.s32.totalorder %s72, 0
      %s75 = sadd.s32 %s74, 1
      %s76 = scalar_select %p73, %s74, %s75
      %p79 = pneg %p73
      %p80 = scmp.eq.s32.totalorder %s24, 1
      %p81 = por %p79, %p80
      %p82 = scmp.ne.s32.totalorder %s74, %s77
      %p83 = scmp.eq.s32.totalorder %s24, 0
      %p84 = por %p82, %p83
      %p85 = scmp.ne.s32.totalorder %s74, %s77
      %p86 = scmp.eq.s32.totalorder %s29, 1
      %p87 = por %p85, %p86
      %p88 = scmp.ne.s32.totalorder %s77, %s78
      %p89 = scmp.eq.s32.totalorder %s29, 0
      %p90 = por %p88, %p89
      %p91 = scmp.ne.s32.totalorder %s77, %s78
      %p92 = scmp.eq.s32.totalorder %s30, 1
      %p93 = por %p91, %p92
      %p95 = scmp.ne.s32.totalorder %s78, %s94
      %p96 = scmp.eq.s32.totalorder %s30, 0
      %p97 = por %p95, %p96
      %s99 = sadd.s32 %s98, 1
      %p102 = scmp.eq.s32.totalorder %s24, 1
      %p103 = scmp.ne.s32.totalorder %s98, %s100
      %p104 = scmp.eq.s32.totalorder %s24, 0
      %p105 = por %p103, %p104
      %p106 = scmp.ne.s32.totalorder %s98, %s100
      %p107 = scmp.eq.s32.totalorder %s29, 1
      %p108 = por %p106, %p107
      %p109 = scmp.ne.s32.totalorder %s100, %s101
      %p110 = scmp.eq.s32.totalorder %s29, 0
      %p111 = por %p109, %p110
      %p112 = scmp.ne.s32.totalorder %s100, %s101
      %p113 = scmp.eq.s32.totalorder %s30, 1
      %p114 = por %p112, %p113
      %p116 = scmp.ne.s32.totalorder %s101, %s115
      %p117 = scmp.eq.s32.totalorder %s30, 0
      %p118 = por %p116, %p117
      %s120 = sadd.s32 %s119, 1
      %p123 = scmp.eq.s32.totalorder %s24, 1
      %p124 = scmp.ne.s32.totalorder %s119, %s121
      %p125 = scmp.eq.s32.totalorder %s24, 0
      %p126 = por %p124, %p125
      %p127 = scmp.ne.s32.totalorder %s119, %s121
      %p128 = scmp.eq.s32.totalorder %s29, 1
      %p129 = por %p127, %p128
      %p130 = scmp.ne.s32.totalorder %s121, %s122
      %p131 = scmp.eq.s32.totalorder %s29, 0
      %p132 = por %p130, %p131
      %p133 = scmp.ne.s32.totalorder %s121, %s122
      %p134 = scmp.eq.s32.totalorder %s30, 1
      %p135 = por %p133, %p134
      %p137 = scmp.ne.s32.totalorder %s122, %s136
      %p138 = scmp.eq.s32.totalorder %s30, 0
      %p139 = por %p137, %p138
      %s141 = sadd.s32 %s140, 1
      %p144 = scmp.eq.s32.totalorder %s24, 1
      %p145 = scmp.ne.s32.totalorder %s140, %s142
      %p146 = scmp.eq.s32.totalorder %s24, 0
      %p147 = por %p145, %p146
      %p148 = scmp.ne.s32.totalorder %s140, %s142
      %p149 = scmp.eq.s32.totalorder %s29, 1
      %p150 = por %p148, %p149
      %p151 = scmp.ne.s32.totalorder %s142, %s143
      %p152 = scmp.eq.s32.totalorder %s29, 0
      %p153 = por %p151, %p152
      %p154 = scmp.ne.s32.totalorder %s142, %s143
      %p155 = scmp.eq.s32.totalorder %s30, 1
      %p156 = por %p154, %p155
      %p158 = scmp.ne.s32.totalorder %s143, %s157
      %p159 = scmp.eq.s32.totalorder %s30, 0
      %p160 = por %p158, %p159
      %s162 = sadd.s32 %s161, 1
      %p165 = scmp.eq.s32.totalorder %s24, 1
      %p166 = scmp.ne.s32.totalorder %s161, %s163
      %p167 = scmp.eq.s32.totalorder %s24, 0
      %p168 = por %p166, %p167
      %p169 = scmp.ne.s32.totalorder %s161, %s163
      %p170 = scmp.eq.s32.totalorder %s29, 1
      %p171 = por %p169, %p170
      %p172 = scmp.ne.s32.totalorder %s163, %s164
      %p173 = scmp.eq.s32.totalorder %s29, 0
      %p174 = por %p172, %p173
      %p175 = scmp.ne.s32.totalorder %s163, %s164
      %p176 = scmp.eq.s32.totalorder %s30, 1
      %p177 = por %p175, %p176
      %p179 = scmp.ne.s32.totalorder %s164, %s178
      %p180 = scmp.eq.s32.totalorder %s30, 0
      %p181 = por %p179, %p180
      %s183 = sadd.s32 %s182, 1
      %p186 = scmp.eq.s32.totalorder %s24, 1
      %p187 = scmp.ne.s32.totalorder %s182, %s184
      %p188 = scmp.eq.s32.totalorder %s24, 0
      %p189 = por %p187, %p188
      %p190 = scmp.ne.s32.totalorder %s182, %s184
      %p191 = scmp.eq.s32.totalorder %s29, 1
      %p192 = por %p190, %p191
      %p193 = scmp.ne.s32.totalorder %s184, %s185
      %p194 = scmp.eq.s32.totalorder %s29, 0
      %p195 = por %p193, %p194
      %p196 = scmp.ne.s32.totalorder %s184, %s185
      %p197 = scmp.eq.s32.totalorder %s30, 1
      %p198 = por %p196, %p197
      %p200 = scmp.ne.s32.totalorder %s185, %s199
      %p201 = scmp.eq.s32.totalorder %s30, 0
      %p202 = por %p200, %p201
      %s203 = ssub.s32 %s31, %s43
      %s204 = ssub.s32 %s32, %s39
      %s205 = sor.u32 %s203, %s204
      %p206 = scmp.eq.s32.totalorder %s205, 0
      %s208 = sadd.s32 %s207, 1
      %s209 = scalar_select %p206, %s207, %s208
      %p212 = pneg %p206
      %p213 = scmp.eq.s32.totalorder %s24, 1
      %p214 = por %p212, %p213
      %p215 = scmp.ne.s32.totalorder %s207, %s210
      %p216 = scmp.eq.s32.totalorder %s24, 0
      %p217 = por %p215, %p216
      %p218 = scmp.ne.s32.totalorder %s207, %s210
      %p219 = scmp.eq.s32.totalorder %s29, 1
      %p220 = por %p218, %p219
      %p221 = scmp.ne.s32.totalorder %s210, %s211
      %p222 = scmp.eq.s32.totalorder %s29, 0
      %p223 = por %p221, %p222
      %p224 = scmp.ne.s32.totalorder %s210, %s211
      %p225 = scmp.eq.s32.totalorder %s30, 1
      %p226 = por %p224, %p225
      %p228 = scmp.ne.s32.totalorder %s211, %s227
      %p229 = scmp.eq.s32.totalorder %s30, 0
      %p230 = por %p228, %p229
      %p231 = scmp.le.s32.totalorder 1, %s24
      %p232 = scmp.lt.s32.totalorder %s24, 3
      %p233 = pnand %p231, %p232
      %p234 = pneg %p233
      // Predicated region
      $region9: #{tpu_custom_call.1} parent=5 // pred_check
        _
      $region10: #{tpu_custom_call.1} parent=5 // pred_check_branch
        %236 = sbr.rel (%p233) target = $region12
      $region11: #{tpu_custom_call.1} parent=5 // pred_region
        %s237 = ssub.s32 %s24, 1
        // Predicated region
        $region13: #{tpu_custom_call.1} parent=11 // pred_check
          %p238 = pneg %p111
        $region14: #{tpu_custom_call.1} parent=11 // pred_check_branch
          %240 = sbr.rel (%p238) target = $region16
        $region15: #{tpu_custom_call.1} parent=11 // pred_region
          %242 = vsyncadd [#allocation6], 0
          %s243 = sshll.u32 %s2, 4
          %s244 = int_to_ptr.hbm [resolvable:$true] %s243
          %s245 = sshll.u32 [#allocation7], 4
          %s246 = int_to_ptr.vmem [resolvable:$true] %s245
          %251 = dma.hbm_to_vmem [thread:$0]  %s244, 256, %s246, [#allocation6], 64, 64, 4
        $region16: #{tpu_custom_call.1} parent=11 // pred_fallthru
          _
        // Predicated region
        $region17: #{tpu_custom_call.1} parent=11 // pred_check
          %p252 = pneg %p132
        $region18: #{tpu_custom_call.1} parent=11 // pred_check_branch
          %254 = sbr.rel (%p252) target = $region20
        $region19: #{tpu_custom_call.1} parent=11 // pred_region
          %256 = vsyncadd [#allocation9], 0
          %s257 = sshll.u32 %s3, 4
          %s258 = int_to_ptr.hbm [resolvable:$true] %s257
          %s259 = sshll.u32 [#allocation8], 4
          %s260 = int_to_ptr.vmem [resolvable:$true] %s259
          %265 = dma.hbm_to_vmem [thread:$0]  %s258, 256, %s260, [#allocation9], 64, 64, 4
        $region20: #{tpu_custom_call.1} parent=11 // pred_fallthru
          _
        // Predicated region
        $region21: #{tpu_custom_call.1} parent=11 // pred_check
          %p266 = pneg %p153
        $region22: #{tpu_custom_call.1} parent=11 // pred_check_branch
          %268 = sbr.rel (%p266) target = $region24
        $region23: #{tpu_custom_call.1} parent=11 // pred_region
          %270 = vsyncadd [#allocation9], 0
          %s271 = sshll.u32 %s4, 4
          %s272 = int_to_ptr.hbm [resolvable:$true] %s271
          %s273 = sshll.u32 [#allocation10], 4
          %s274 = int_to_ptr.vmem [resolvable:$true] %s273
          %279 = dma.hbm_to_vmem [thread:$0]  %s272, 256, %s274, [#allocation9], 64, 64, 4
        $region24: #{tpu_custom_call.1} parent=11 // pred_fallthru
          _
        // Predicated region
        $region25: #{tpu_custom_call.1} parent=11 // pred_check
          %p280 = pneg %p174
        $region26: #{tpu_custom_call.1} parent=11 // pred_check_branch
          %282 = sbr.rel (%p280) target = $region28
        $region27: #{tpu_custom_call.1} parent=11 // pred_region
          %284 = vsyncadd [#allocation12], 0
          %s285 = sshll.u32 %s5, 4
          %s286 = int_to_ptr.hbm [resolvable:$true] %s285
          %s287 = sshll.u32 [#allocation11], 4
          %s288 = int_to_ptr.vmem [resolvable:$true] %s287
          %293 = dma.hbm_to_vmem [thread:$0]  %s286, 512, %s288, [#allocation12], 64, 64, 4
        $region28: #{tpu_custom_call.1} parent=11 // pred_fallthru
          _
        // Predicated region
        $region29: #{tpu_custom_call.1} parent=11 // pred_check
          %p294 = pneg %p195
        $region30: #{tpu_custom_call.1} parent=11 // pred_check_branch
          %296 = sbr.rel (%p294) target = $region32
        $region31: #{tpu_custom_call.1} parent=11 // pred_region
          _
        $region32: #{tpu_custom_call.1} parent=11 // pred_fallthru
          _
      $region12: #{tpu_custom_call.1} parent=5 // pred_fallthru
        _
      %p297 = scmp.lt.s32.totalorder %s24, 2
      // Predicated region
      $region33: #{tpu_custom_call.1} parent=5 // pred_check
        %p298 = pneg %p297
      $region34: #{tpu_custom_call.1} parent=5 // pred_check_branch
        %300 = sbr.rel (%p298) target = $region36
      $region35: #{tpu_custom_call.1} parent=5 // pred_region
        // Predicated region
        $region37: #{tpu_custom_call.1} parent=35 // pred_check
          %p301 = pneg %p58
        $region38: #{tpu_custom_call.1} parent=35 // pred_check_branch
          %303 = sbr.rel (%p301) target = $region40
        $region39: #{tpu_custom_call.1} parent=35 // pred_region
          %s304 = sand.u32 %s48, 1
          %s305 = scalar_lea.sflag [#allocation3], %s304
          %s306 = sand.u32 %s48, 1
          %s307 = smul.addr %s306, 8
          %s308 = scalar_lea.vmem [#allocation2], %s307
          %s309 = smul.u32 2, %s32
          %311 = vsyncadd %s305, 0
          %s312 = smul.addr %s31, 2
          %s313 = sadd.s32 %s309, %s312
          %s314 = smul.addr %s313, 4
          %s315 = scalar_lea.hbm %s0, %s314
          %s316 = sshll.u32 %s315, 4
          %s317 = int_to_ptr.hbm [resolvable:$true] %s316
          %s318 = sshll.u32 %s308, 4
          %s319 = int_to_ptr.vmem [resolvable:$true] %s318
          %324 = dma.hbm_to_vmem [thread:$0]  %s317, 128, %s319, %s305, 64, 64, 4
        $region40: #{tpu_custom_call.1} parent=35 // pred_fallthru
          _
        // Predicated region
        $region41: #{tpu_custom_call.1} parent=35 // pred_check
          %p325 = pneg %p84
        $region42: #{tpu_custom_call.1} parent=35 // pred_check_branch
          %327 = sbr.rel (%p325) target = $region44
        $region43: #{tpu_custom_call.1} parent=35 // pred_region
          %s328 = sand.u32 %s24, 1
          %s329 = scalar_lea.sflag [#allocation6], %s328
          %s330 = sand.u32 %s74, 1
          %s331 = smul.addr %s330, 4
          %s332 = scalar_lea.vmem [#allocation5], %s331
          %334 = vsyncadd %s329, 0
          %s335 = smul.addr %s31, 4
          %s336 = scalar_lea.hbm %s1, %s335
          %s338 = sshll.u32 %s336, 4
          %s339 = int_to_ptr.hbm [resolvable:$true] %s338
          %s340 = sshll.u32 %s332, 4
          %s341 = int_to_ptr.vmem [resolvable:$true] %s340
          %343 = dma.hbm_to_vmem [thread:$0]  %s339, 64, %s341, %s329
        $region44: #{tpu_custom_call.1} parent=35 // pred_fallthru
          _
      $region36: #{tpu_custom_call.1} parent=5 // pred_fallthru
        _
      %p344 = scmp.le.s32.totalorder 1, %s24
      %p345 = scmp.lt.s32.totalorder %s24, 3
      %p346 = pnand %p344, %p345
      %p347 = pneg %p346
      // Predicated region
      $region45: #{tpu_custom_call.1} parent=5 // pred_check
        _
      $region46: #{tpu_custom_call.1} parent=5 // pred_check_branch
        %349 = sbr.rel (%p346) target = $region48
      $region47: #{tpu_custom_call.1} parent=5 // pred_region
        %s350 = ssub.s32 %s24, 1
        %s351 = sand.u32 %s51, 1
        %s352 = scalar_lea.sflag [#allocation3], %s351
        %s353 = sand.u32 %s51, 1
        %s354 = smul.addr %s353, 8
        %s355 = scalar_lea.vmem [#allocation2], %s354
        // Predicated region
        $region49: #{tpu_custom_call.1} parent=47 // pred_check
          %p356 = pneg %p64
        $region50: #{tpu_custom_call.1} parent=47 // pred_check_branch
          %358 = sbr.rel (%p356) target = $region52
        $region51: #{tpu_custom_call.1} parent=47 // pred_region
          %360 = dma.done %s352, 128
        $region52: #{tpu_custom_call.1} parent=47 // pred_fallthru
          _
        %s361 = sand.u32 %s29, 1
        %s362 = scalar_lea.sflag [#allocation6], %s361
        %s363 = sand.u32 %s77, 1
        %s364 = smul.addr %s363, 4
        %s365 = scalar_lea.vmem [#allocation5], %s364
        // Predicated region
        $region53: #{tpu_custom_call.1} parent=47 // pred_check
          %p366 = pneg %p90
        $region54: #{tpu_custom_call.1} parent=47 // pred_check_branch
          %368 = sbr.rel (%p366) target = $region56
        $region55: #{tpu_custom_call.1} parent=47 // pred_region
          %370 = dma.done %s362, 64
        $region56: #{tpu_custom_call.1} parent=47 // pred_fallthru
          _
        // Predicated region
        $region57: #{tpu_custom_call.1} parent=47 // pred_check
          %p371 = pneg %p111
        $region58: #{tpu_custom_call.1} parent=47 // pred_check_branch
          %373 = sbr.rel (%p371) target = $region60
        $region59: #{tpu_custom_call.1} parent=47 // pred_region
          %375 = dma.done [#allocation6], 256
        $region60: #{tpu_custom_call.1} parent=47 // pred_fallthru
          _
        // Predicated region
        $region61: #{tpu_custom_call.1} parent=47 // pred_check
          %p376 = pneg %p132
        $region62: #{tpu_custom_call.1} parent=47 // pred_check_branch
          %378 = sbr.rel (%p376) target = $region64
        $region63: #{tpu_custom_call.1} parent=47 // pred_region
          %380 = dma.done [#allocation9], 256
        $region64: #{tpu_custom_call.1} parent=47 // pred_fallthru
          _
        // Predicated region
        $region65: #{tpu_custom_call.1} parent=47 // pred_check
          %p381 = pneg %p153
        $region66: #{tpu_custom_call.1} parent=47 // pred_check_branch
          %383 = sbr.rel (%p381) target = $region68
        $region67: #{tpu_custom_call.1} parent=47 // pred_region
          %385 = dma.done [#allocation9], 256
        $region68: #{tpu_custom_call.1} parent=47 // pred_fallthru
          _
        // Predicated region
        $region69: #{tpu_custom_call.1} parent=47 // pred_check
          %p386 = pneg %p174
        $region70: #{tpu_custom_call.1} parent=47 // pred_check_branch
          %388 = sbr.rel (%p386) target = $region72
        $region71: #{tpu_custom_call.1} parent=47 // pred_region
          %390 = dma.done [#allocation12], 512
        $region72: #{tpu_custom_call.1} parent=47 // pred_fallthru
          _
        %s391 = sand.u32 %s51, 1
        %s392 = scalar_lea.sflag [#allocation3], %s391
        %s393 = sand.u32 %s51, 1
        %s394 = smul.addr %s393, 8
        %s395 = scalar_lea.vmem [#allocation2], %s394
        %p396 = pneg %p64
        %p397 = pneg %p61
        %s398 = sand.u32 %s29, 1
        %s399 = scalar_lea.sflag [#allocation6], %s398
        %s400 = sand.u32 %s77, 1
        %s401 = smul.addr %s400, 4
        %s402 = scalar_lea.vmem [#allocation5], %s401
        %p403 = pneg %p90
        %p404 = pneg %p87
        %p405 = pneg %p111
        %p406 = pneg %p108
        %p407 = pneg %p132
        %p408 = pneg %p129
        %p409 = pneg %p153
        %p410 = pneg %p150
        %p411 = pneg %p174
        %p412 = pneg %p171
        %p413 = pneg %p195
        %p414 = pneg %p192
        %p415 = pneg %p223
        %p416 = pneg %p220
        %s417 = sand.u32 %s210, 1
        %s418 = scalar_lea.sflag [#allocation4], %s417
        %s419 = sand.u32 %s210, 1
        %s420 = smul.addr %s419, 16
        %s421 = scalar_lea.vmem [#allocation13], %s420
        %s422 = smul.u32 2, %s34
        %s423 = smul.u32 2, %s34
        %v425 = vld [vmem:[%s355] sm:$0xf]
        %v426 = vld [vmem:[%s355 + $0x4] sm:$0xf]
        %v427 = vld [vmem:[%s365] sm:$0xf]
        %v428 = vld [vmem:[#allocation7] sm:$0xf]
        %v429 = vld [vmem:[#allocation7 + $0x4] sm:$0xf]
        %v430 = vld [vmem:[#allocation7 + $0x8] sm:$0xf]
        %v431 = vld [vmem:[#allocation7 + $0xc] sm:$0xf]
        %v434 = vunpack.c.l.b16 %v425
        %v435 = vunpack.c.l.b16 %v426
        %v436 = vpack.c.b16 %v435, %v434
        %v441 = vunpack.c.l.b16 %v428
        %v442 = vunpack.c.l.b16 %v429
        %v443 = vunpack.c.l.b16 %v430
        %v444 = vunpack.c.l.b16 %v431
        %v445 = vpack.c.b16 %v442, %v441
        %v446 = vpack.c.b16 %v444, %v443
        %vm449 = vcmask 261120
        %v451 = vsel %vm449, %v436, 0
        %453 = vmatpush.bf16.msra.mxu0 0
        %454 = vmatpush.bf16.msra.mxu0 0
        %455 = vmatpush.bf16.msra.mxu0 0
        %456 = vmatpush.bf16.msra.mxu0 0
        %457 = vmatpush.bf16.msra.mxu0 0
        %458 = vmatpush.bf16.msra.mxu0 0
        %459 = vmatpush.bf16.msra.mxu0 %v446
        %460 = vmatpush.bf16.msra.mxu0 %v445
        %461 = vmatmul.bf16.gmra.mxu0 %v451
        %v462 = vpop.f32.mrf.mxu0
        %v463 = vadd.f32 0.0, %v462
        %v464 = vpop.f32.mrf.mxu0
        %v465 = vadd.f32 0.0, %v464
        %466 = vdwg.mxu0
        %v467 = vld [vmem:[#allocation8] sm:$0xf]
        %v468 = vld [vmem:[#allocation8 + $0x4] sm:$0xf]
        %v469 = vld [vmem:[#allocation8 + $0x8] sm:$0xf]
        %v470 = vld [vmem:[#allocation8 + $0xc] sm:$0xf]
        %v475 = vunpack.c.l.b16 %v467
        %v476 = vunpack.c.l.b16 %v468
        %v477 = vunpack.c.l.b16 %v469
        %v478 = vunpack.c.l.b16 %v470
        %v479 = vpack.c.b16 %v476, %v475
        %v480 = vpack.c.b16 %v478, %v477
        %v484 = vsel %vm449, %v427, 0
        %486 = vmatpush.bf16.msra.mxu0 0
        %487 = vmatpush.bf16.msra.mxu0 0
        %488 = vmatpush.bf16.msra.mxu0 0
        %489 = vmatpush.bf16.msra.mxu0 0
        %490 = vmatpush.bf16.msra.mxu0 0
        %491 = vmatpush.bf16.msra.mxu0 0
        %492 = vmatpush.bf16.msra.mxu0 %v480
        %493 = vmatpush.bf16.msra.mxu0 %v479
        %494 = vmatmul.bf16.gmra.mxu0 %v484
        %v495 = vpop.f32.mrf.mxu0
        %v496 = vadd.f32 0.0, %v495
        %v497 = vpop.f32.mrf.mxu0
        %498 = vdwg.mxu0
        %v499 = vld [vmem:[#allocation10] sm:$0xf]
        %v500 = vld [vmem:[#allocation10 + $0x4] sm:$0xf]
        %v501 = vld [vmem:[#allocation10 + $0x8] sm:$0xf]
        %v502 = vld [vmem:[#allocation10 + $0xc] sm:$0xf]
        %v507 = vunpack.c.l.b16 %v499
        %v508 = vunpack.c.l.b16 %v500
        %v509 = vunpack.c.l.b16 %v501
        %v510 = vunpack.c.l.b16 %v502
        %v511 = vpack.c.b16 %v508, %v507
        %v512 = vpack.c.b16 %v510, %v509
        %515 = vmatpush.bf16.msra.mxu0 0
        %516 = vmatpush.bf16.msra.mxu0 0
        %517 = vmatpush.bf16.msra.mxu0 0
        %518 = vmatpush.bf16.msra.mxu0 0
        %519 = vmatpush.bf16.msra.mxu0 0
        %520 = vmatpush.bf16.msra.mxu0 0
        %521 = vmatpush.bf16.msra.mxu0 %v512
        %522 = vmatpush.bf16.msra.mxu0 %v511
        %523 = vmatmul.bf16.gmra.mxu0 %v484
        %v524 = vpop.f32.mrf.mxu0
        %v525 = vadd.f32 0.0, %v524
        %v526 = vpop.f32.mrf.mxu0
        %527 = vdwg.mxu0
        %v528 = vpack.c.bf16 %v463, %v463
        %v529 = vpack.c.bf16 %v465, %v465
        %532 = vrot.lane.b32.xlu0 %v528, 112
        %v533 = vpop.permute.xlu0 %532
        %534 = vrot.lane.b32.xlu0 %v529, 112
        %v535 = vpop.permute.xlu0 %534
        %536 = vrot.lane.b32.xlu0 %v528, 96
        %v537 = vpop.permute.xlu0 %536
        %538 = vrot.lane.b32.xlu0 %v529, 96
        %v539 = vpop.permute.xlu0 %538
        %540 = vrot.lane.b32.xlu0 %v528, 80
        %v541 = vpop.permute.xlu0 %540
        %542 = vrot.lane.b32.xlu0 %v529, 80
        %v543 = vpop.permute.xlu0 %542
        %v546 = vpack.i.b16 %v533, %v528
        %v547 = vshrl.u32 %v528, 16
        %v548 = vshrl.u32 %v533, 16
        %v549 = vpack.i.b16 %v548, %v547
        %v552 = vpack.i.b16 %v541, %v537
        %v553 = vshrl.u32 %v537, 16
        %v554 = vshrl.u32 %v541, 16
        %v555 = vpack.i.b16 %v554, %v553
        %v558 = vpack.i.b16 %v535, %v529
        %v559 = vshrl.u32 %v529, 16
        %v560 = vshrl.u32 %v535, 16
        %v561 = vpack.i.b16 %v560, %v559
        %v564 = vpack.i.b16 %v543, %v539
        %v565 = vshrl.u32 %v539, 16
        %v566 = vshrl.u32 %v543, 16
        %v567 = vpack.i.b16 %v566, %v565
        %v570 = vunpack.c.l.s4 1983009808
        %v571 = vunpack.c.0.s8 %v570
        %v572 = vperm.slane %v546, %v571
        %v575 = vunpack.c.l.s4 1983009808
        %v576 = vunpack.c.0.s8 %v575
        %v577 = vperm.slane %v552, %v576
        %v578 = vrot.slane %v577, 4
        %vm579 = vcmask 1047556
        %v580 = vsel %vm579, %v578, %v572
        %v581 = vrot.slane %v572, 4
        %v582 = vsel %vm579, %v577, %v581
        %v584 = vunpack.c.l.s4 1934713408
        %v585 = vunpack.c.0.s8 %v584
        %v586 = vperm.slane %v580, %v585
        %v588 = vunpack.c.l.s4 1934713408
        %v589 = vunpack.c.0.s8 %v588
        %v590 = vperm.slane %v582, %v589
        %v591 = vrot.slane %v586, 4
        %v592 = vsel %vm579, 0, %v591
        %v593 = vrot.slane %v590, 4
        %v594 = vsel %vm579, 0, %v593
        %v597 = vunpack.c.l.s4 1983009808
        %v598 = vunpack.c.0.s8 %v597
        %v599 = vperm.slane %v549, %v598
        %v602 = vunpack.c.l.s4 1983009808
        %v603 = vunpack.c.0.s8 %v602
        %v604 = vperm.slane %v555, %v603
        %v605 = vrot.slane %v604, 4
        %v606 = vsel %vm579, %v605, %v599
        %v607 = vrot.slane %v599, 4
        %v608 = vsel %vm579, %v604, %v607
        %v610 = vunpack.c.l.s4 1934713408
        %v611 = vunpack.c.0.s8 %v610
        %v612 = vperm.slane %v606, %v611
        %v614 = vunpack.c.l.s4 1934713408
        %v615 = vunpack.c.0.s8 %v614
        %v616 = vperm.slane %v608, %v615
        %v617 = vrot.slane %v612, 4
        %v618 = vsel %vm579, 0, %v617
        %v619 = vrot.slane %v616, 4
        %v620 = vsel %vm579, 0, %v619
        %v623 = vunpack.c.l.s4 1983009808
        %v624 = vunpack.c.0.s8 %v623
        %v625 = vperm.slane %v558, %v624
        %v628 = vunpack.c.l.s4 1983009808
        %v629 = vunpack.c.0.s8 %v628
        %v630 = vperm.slane %v564, %v629
        %v631 = vrot.slane %v630, 4
        %v632 = vsel %vm579, %v631, %v625
        %v633 = vrot.slane %v625, 4
        %v634 = vsel %vm579, %v630, %v633
        %v636 = vunpack.c.l.s4 1934713408
        %v637 = vunpack.c.0.s8 %v636
        %v638 = vperm.slane %v632, %v637
        %v640 = vunpack.c.l.s4 1934713408
        %v641 = vunpack.c.0.s8 %v640
        %v642 = vperm.slane %v634, %v641
        %v643 = vrot.slane %v638, 4
        %v644 = vsel %vm579, 0, %v643
        %v645 = vrot.slane %v642, 4
        %v646 = vsel %vm579, 0, %v645
        %v649 = vunpack.c.l.s4 1983009808
        %v650 = vunpack.c.0.s8 %v649
        %v651 = vperm.slane %v561, %v650
        %v654 = vunpack.c.l.s4 1983009808
        %v655 = vunpack.c.0.s8 %v654
        %v656 = vperm.slane %v567, %v655
        %v657 = vrot.slane %v656, 4
        %v658 = vsel %vm579, %v657, %v651
        %v659 = vrot.slane %v651, 4
        %v660 = vsel %vm579, %v656, %v659
        %v662 = vunpack.c.l.s4 1934713408
        %v663 = vunpack.c.0.s8 %v662
        %v664 = vperm.slane %v658, %v663
        %v666 = vunpack.c.l.s4 1934713408
        %v667 = vunpack.c.0.s8 %v666
        %v668 = vperm.slane %v660, %v667
        %v669 = vrot.slane %v664, 4
        %v670 = vsel %vm579, 0, %v669
        %v671 = vrot.slane %v668, 4
        %v672 = vsel %vm579, 0, %v671
        %v673 = vsel %vm579, %v593, %v586
        %v675 = vunpack.c.l.s4 1983009808
        %v676 = vunpack.c.0.s8 %v675
        %v677 = vperm.slane %v673, %v676
        %v678 = vrot.slane %v594, 4
        %v679 = vsel %vm579, %v678, %v592
        %v681 = vunpack.c.l.s4 1983009808
        %v682 = vunpack.c.0.s8 %v681
        %v683 = vperm.slane %v679, %v682
        %v684 = vrot.slane %v683, 4
        %v685 = vsel %vm579, %v684, %v677
        %v687 = vunpack.c.l.s4 1934713408
        %v688 = vunpack.c.0.s8 %v687
        %v689 = vperm.slane %v685, %v688
        %v690 = vrot.slane %v689, 4
        %v691 = vsel %vm579, 0, %v690
        %v692 = vsel %vm579, %v619, %v612
        %v694 = vunpack.c.l.s4 1983009808
        %v695 = vunpack.c.0.s8 %v694
        %v696 = vperm.slane %v692, %v695
        %v697 = vrot.slane %v620, 4
        %v698 = vsel %vm579, %v697, %v618
        %v700 = vunpack.c.l.s4 1983009808
        %v701 = vunpack.c.0.s8 %v700
        %v702 = vperm.slane %v698, %v701
        %v703 = vrot.slane %v702, 4
        %v704 = vsel %vm579, %v703, %v696
        %v706 = vunpack.c.l.s4 1934713408
        %v707 = vunpack.c.0.s8 %v706
        %v708 = vperm.slane %v704, %v707
        %v709 = vrot.slane %v708, 4
        %v710 = vsel %vm579, 0, %v709
        %v711 = vsel %vm579, %v645, %v638
        %v713 = vunpack.c.l.s4 1983009808
        %v714 = vunpack.c.0.s8 %v713
        %v715 = vperm.slane %v711, %v714
        %v716 = vrot.slane %v646, 4
        %v717 = vsel %vm579, %v716, %v644
        %v719 = vunpack.c.l.s4 1983009808
        %v720 = vunpack.c.0.s8 %v719
        %v721 = vperm.slane %v717, %v720
        %v722 = vrot.slane %v721, 4
        %v723 = vsel %vm579, %v722, %v715
        %v725 = vunpack.c.l.s4 1934713408
        %v726 = vunpack.c.0.s8 %v725
        %v727 = vperm.slane %v723, %v726
        %v728 = vrot.slane %v727, 4
        %v729 = vsel %vm579, 0, %v728
        %v730 = vsel %vm579, %v671, %v664
        %v732 = vunpack.c.l.s4 1983009808
        %v733 = vunpack.c.0.s8 %v732
        %v734 = vperm.slane %v730, %v733
        %v735 = vrot.slane %v672, 4
        %v736 = vsel %vm579, %v735, %v670
        %v738 = vunpack.c.l.s4 1983009808
        %v739 = vunpack.c.0.s8 %v738
        %v740 = vperm.slane %v736, %v739
        %v741 = vrot.slane %v740, 4
        %v742 = vsel %vm579, %v741, %v734
        %v744 = vunpack.c.l.s4 1934713408
        %v745 = vunpack.c.0.s8 %v744
        %v746 = vperm.slane %v742, %v745
        %v747 = vrot.slane %v746, 4
        %v748 = vsel %vm579, 0, %v747
        %v751 = vpack.i.b16 %v708, %v689
        %v752 = vshrl.u32 %v689, 16
        %v753 = vshrl.u32 %v708, 16
        %v754 = vpack.i.b16 %v753, %v752
        %v757 = vpack.i.b16 %v710, %v691
        %v758 = vshrl.u32 %v691, 16
        %v759 = vshrl.u32 %v710, 16
        %v760 = vpack.i.b16 %v759, %v758
        %v763 = vpack.i.b16 %v746, %v727
        %v764 = vshrl.u32 %v727, 16
        %v765 = vshrl.u32 %v746, 16
        %v766 = vpack.i.b16 %v765, %v764
        %v769 = vpack.i.b16 %v748, %v729
        %v770 = vshrl.u32 %v729, 16
        %v771 = vshrl.u32 %v748, 16
        %v772 = vpack.i.b16 %v771, %v770
        %v773 = vpack.c.bf16 %v496, %v496
        %775 = vrot.lane.b32.xlu0 %v773, 112
        %v776 = vpop.permute.xlu0 %775
        %777 = vrot.lane.b32.xlu0 %v773, 96
        %v778 = vpop.permute.xlu0 %777
        %779 = vrot.lane.b32.xlu0 %v773, 80
        %v780 = vpop.permute.xlu0 %779
        %v783 = vpack.i.b16 %v776, %v773
        %v784 = vshrl.u32 %v773, 16
        %v785 = vshrl.u32 %v776, 16
        %v786 = vpack.i.b16 %v785, %v784
        %v789 = vpack.i.b16 %v780, %v778
        %v790 = vshrl.u32 %v778, 16
        %v791 = vshrl.u32 %v780, 16
        %v792 = vpack.i.b16 %v791, %v790
        %v795 = vunpack.c.l.s4 1983009808
        %v796 = vunpack.c.0.s8 %v795
        %v797 = vperm.slane %v783, %v796
        %v800 = vunpack.c.l.s4 1983009808
        %v801 = vunpack.c.0.s8 %v800
        %v802 = vperm.slane %v789, %v801
        %v803 = vrot.slane %v802, 4
        %v804 = vsel %vm579, %v803, %v797
        %v805 = vrot.slane %v797, 4
        %v806 = vsel %vm579, %v802, %v805
        %v808 = vunpack.c.l.s4 1934713408
        %v809 = vunpack.c.0.s8 %v808
        %v810 = vperm.slane %v804, %v809
        %v812 = vunpack.c.l.s4 1934713408
        %v813 = vunpack.c.0.s8 %v812
        %v814 = vperm.slane %v806, %v813
        %v815 = vrot.slane %v810, 4
        %v816 = vsel %vm579, 0, %v815
        %v817 = vrot.slane %v814, 4
        %v818 = vsel %vm579, 0, %v817
        %v821 = vunpack.c.l.s4 1983009808
        %v822 = vunpack.c.0.s8 %v821
        %v823 = vperm.slane %v786, %v822
        %v826 = vunpack.c.l.s4 1983009808
        %v827 = vunpack.c.0.s8 %v826
        %v828 = vperm.slane %v792, %v827
        %v829 = vrot.slane %v828, 4
        %v830 = vsel %vm579, %v829, %v823
        %v831 = vrot.slane %v823, 4
        %v832 = vsel %vm579, %v828, %v831
        %v834 = vunpack.c.l.s4 1934713408
        %v835 = vunpack.c.0.s8 %v834
        %v836 = vperm.slane %v830, %v835
        %v838 = vunpack.c.l.s4 1934713408
        %v839 = vunpack.c.0.s8 %v838
        %v840 = vperm.slane %v832, %v839
        %v841 = vrot.slane %v836, 4
        %v842 = vsel %vm579, 0, %v841
        %v843 = vrot.slane %v840, 4
        %v844 = vsel %vm579, 0, %v843
        %v845 = vsel %vm579, %v817, %v810
        %v847 = vunpack.c.l.s4 1983009808
        %v848 = vunpack.c.0.s8 %v847
        %v849 = vperm.slane %v845, %v848
        %v850 = vrot.slane %v818, 4
        %v851 = vsel %vm579, %v850, %v816
        %v853 = vunpack.c.l.s4 1983009808
        %v854 = vunpack.c.0.s8 %v853
        %v855 = vperm.slane %v851, %v854
        %v856 = vrot.slane %v855, 4
        %v857 = vsel %vm579, %v856, %v849
        %v859 = vunpack.c.l.s4 1934713408
        %v860 = vunpack.c.0.s8 %v859
        %v861 = vperm.slane %v857, %v860
        %v862 = vrot.slane %v861, 4
        %v863 = vsel %vm579, 0, %v862
        %v864 = vsel %vm579, %v843, %v836
        %v866 = vunpack.c.l.s4 1983009808
        %v867 = vunpack.c.0.s8 %v866
        %v868 = vperm.slane %v864, %v867
        %v869 = vrot.slane %v844, 4
        %v870 = vsel %vm579, %v869, %v842
        %v872 = vunpack.c.l.s4 1983009808
        %v873 = vunpack.c.0.s8 %v872
        %v874 = vperm.slane %v870, %v873
        %v875 = vrot.slane %v874, 4
        %v876 = vsel %vm579, %v875, %v868
        %v878 = vunpack.c.l.s4 1934713408
        %v879 = vunpack.c.0.s8 %v878
        %v880 = vperm.slane %v876, %v879
        %v881 = vrot.slane %v880, 4
        %v882 = vsel %vm579, 0, %v881
        %v885 = vpack.i.b16 %v880, %v861
        %v886 = vshrl.u32 %v861, 16
        %v887 = vshrl.u32 %v880, 16
        %v888 = vpack.i.b16 %v887, %v886
        %v891 = vpack.i.b16 %v882, %v863
        %v892 = vshrl.u32 %v863, 16
        %v893 = vshrl.u32 %v882, 16
        %v894 = vpack.i.b16 %v893, %v892
        %v895 = vpack.c.bf16 %v525, %v525
        %897 = vrot.lane.b32.xlu0 %v895, 112
        %v898 = vpop.permute.xlu0 %897
        %899 = vrot.lane.b32.xlu0 %v895, 96
        %v900 = vpop.permute.xlu0 %899
        %901 = vrot.lane.b32.xlu0 %v895, 80
        %v902 = vpop.permute.xlu0 %901
        %v905 = vpack.i.b16 %v898, %v895
        %v906 = vshrl.u32 %v895, 16
        %v907 = vshrl.u32 %v898, 16
        %v908 = vpack.i.b16 %v907, %v906
        %v911 = vpack.i.b16 %v902, %v900
        %v912 = vshrl.u32 %v900, 16
        %v913 = vshrl.u32 %v902, 16
        %v914 = vpack.i.b16 %v913, %v912
        %v917 = vunpack.c.l.s4 1983009808
        %v918 = vunpack.c.0.s8 %v917
        %v919 = vperm.slane %v905, %v918
        %v922 = vunpack.c.l.s4 1983009808
        %v923 = vunpack.c.0.s8 %v922
        %v924 = vperm.slane %v911, %v923
        %v925 = vrot.slane %v924, 4
        %v926 = vsel %vm579, %v925, %v919
        %v927 = vrot.slane %v919, 4
        %v928 = vsel %vm579, %v924, %v927
        %v930 = vunpack.c.l.s4 1934713408
        %v931 = vunpack.c.0.s8 %v930
        %v932 = vperm.slane %v926, %v931
        %v934 = vunpack.c.l.s4 1934713408
        %v935 = vunpack.c.0.s8 %v934
        %v936 = vperm.slane %v928, %v935
        %v937 = vrot.slane %v932, 4
        %v938 = vsel %vm579, 0, %v937
        %v939 = vrot.slane %v936, 4
        %v940 = vsel %vm579, 0, %v939
        %v943 = vunpack.c.l.s4 1983009808
        %v944 = vunpack.c.0.s8 %v943
        %v945 = vperm.slane %v908, %v944
        %v948 = vunpack.c.l.s4 1983009808
        %v949 = vunpack.c.0.s8 %v948
        %v950 = vperm.slane %v914, %v949
        %v951 = vrot.slane %v950, 4
        %v952 = vsel %vm579, %v951, %v945
        %v953 = vrot.slane %v945, 4
        %v954 = vsel %vm579, %v950, %v953
        %v956 = vunpack.c.l.s4 1934713408
        %v957 = vunpack.c.0.s8 %v956
        %v958 = vperm.slane %v952, %v957
        %v960 = vunpack.c.l.s4 1934713408
        %v961 = vunpack.c.0.s8 %v960
        %v962 = vperm.slane %v954, %v961
        %v963 = vrot.slane %v958, 4
        %v964 = vsel %vm579, 0, %v963
        %v965 = vrot.slane %v962, 4
        %v966 = vsel %vm579, 0, %v965
        %v967 = vsel %vm579, %v939, %v932
        %v969 = vunpack.c.l.s4 1983009808
        %v970 = vunpack.c.0.s8 %v969
        %v971 = vperm.slane %v967, %v970
        %v972 = vrot.slane %v940, 4
        %v973 = vsel %vm579, %v972, %v938
        %v975 = vunpack.c.l.s4 1983009808
        %v976 = vunpack.c.0.s8 %v975
        %v977 = vperm.slane %v973, %v976
        %v978 = vrot.slane %v977, 4
        %v979 = vsel %vm579, %v978, %v971
        %v981 = vunpack.c.l.s4 1934713408
        %v982 = vunpack.c.0.s8 %v981
        %v983 = vperm.slane %v979, %v982
        %v984 = vrot.slane %v983, 4
        %v985 = vsel %vm579, 0, %v984
        %v986 = vsel %vm579, %v965, %v958
        %v988 = vunpack.c.l.s4 1983009808
        %v989 = vunpack.c.0.s8 %v988
        %v990 = vperm.slane %v986, %v989
        %v991 = vrot.slane %v966, 4
        %v992 = vsel %vm579, %v991, %v964
        %v994 = vunpack.c.l.s4 1983009808
        %v995 = vunpack.c.0.s8 %v994
        %v996 = vperm.slane %v992, %v995
        %v997 = vrot.slane %v996, 4
        %v998 = vsel %vm579, %v997, %v990
        %v1000 = vunpack.c.l.s4 1934713408
        %v1001 = vunpack.c.0.s8 %v1000
        %v1002 = vperm.slane %v998, %v1001
        %v1003 = vrot.slane %v1002, 4
        %v1004 = vsel %vm579, 0, %v1003
        %v1007 = vpack.i.b16 %v1002, %v983
        %v1008 = vshrl.u32 %v983, 16
        %v1009 = vshrl.u32 %v1002, 16
        %v1010 = vpack.i.b16 %v1009, %v1008
        %v1013 = vpack.i.b16 %v1004, %v985
        %v1014 = vshrl.u32 %v985, 16
        %v1015 = vshrl.u32 %v1004, 16
        %v1016 = vpack.i.b16 %v1015, %v1014
        %v1017 = vunpack.c.l.b16 %v751
        %v1018 = vunpack.c.l.b16 %v763
        %v1019 = vpack.c.b16 %v1018, %v1017
        %vm1020 = vcmask 130048
        %v1022 = vsel %vm1020, %v1019, 0
        %v1025 = vsel %vm1020, %v885, 0
        %1027 = vmatpush.bf16.xpose.msra.mxu0 0
        %1028 = vmatpush.bf16.xpose.msra.mxu0 0
        %1029 = vmatpush.bf16.xpose.msra.mxu0 0
        %1030 = vmatpush.bf16.xpose.msra.mxu0 0
        %1031 = vmatpush.bf16.xpose.msra.mxu0 0
        %1032 = vmatpush.bf16.xpose.msra.mxu0 0
        %1033 = vmatpush.bf16.xpose.msra.mxu0 0
        %1034 = vmatpush.bf16.xpose.msra.mxu0 %v1025
        %1035 = vmatmul.bf16.gmra.mxu0 %v1022
        %v1036 = vpop.f32.mrf.mxu0
        %v1037 = vadd.f32 0.0, %v1036
        %v1038 = vpop.f32.mrf.mxu0
        %v1039 = vadd.f32 0.0, %v1038
        %1040 = vdwg.mxu0
        %v1041 = vunpack.c.l.b16 %v754
        %v1042 = vunpack.c.l.b16 %v766
        %v1043 = vpack.c.b16 %v1042, %v1041
        %v1045 = vsel %vm1020, %v1043, 0
        %v1048 = vsel %vm1020, %v888, 0
        %1050 = vmatpush.bf16.xpose.msra.mxu0 0
        %1051 = vmatpush.bf16.xpose.msra.mxu0 0
        %1052 = vmatpush.bf16.xpose.msra.mxu0 0
        %1053 = vmatpush.bf16.xpose.msra.mxu0 0
        %1054 = vmatpush.bf16.xpose.msra.mxu0 0
        %1055 = vmatpush.bf16.xpose.msra.mxu0 0
        %1056 = vmatpush.bf16.xpose.msra.mxu0 0
        %1057 = vmatpush.bf16.xpose.msra.mxu0 %v1048
        %1058 = vmatmul.bf16.gmra.mxu0 %v1045
        %v1059 = vpop.f32.mrf.mxu0
        %v1060 = vadd.f32 0.0, %v1059
        %v1061 = vpop.f32.mrf.mxu0
        %v1062 = vadd.f32 0.0, %v1061
        %1063 = vdwg.mxu0
        %v1064 = vunpack.c.l.b16 %v757
        %v1065 = vunpack.c.l.b16 %v769
        %v1066 = vpack.c.b16 %v1065, %v1064
        %v1068 = vsel %vm1020, %v1066, 0
        %v1071 = vsel %vm1020, %v891, 0
        %1073 = vmatpush.bf16.xpose.msra.mxu0 0
        %1074 = vmatpush.bf16.xpose.msra.mxu0 0
        %1075 = vmatpush.bf16.xpose.msra.mxu0 0
        %1076 = vmatpush.bf16.xpose.msra.mxu0 0
        %1077 = vmatpush.bf16.xpose.msra.mxu0 0
        %1078 = vmatpush.bf16.xpose.msra.mxu0 0
        %1079 = vmatpush.bf16.xpose.msra.mxu0 0
        %1080 = vmatpush.bf16.xpose.msra.mxu0 %v1071
        %1081 = vmatmul.bf16.gmra.mxu0 %v1068
        %v1082 = vpop.f32.mrf.mxu0
        %v1083 = vadd.f32 0.0, %v1082
        %v1084 = vpop.f32.mrf.mxu0
        %v1085 = vadd.f32 0.0, %v1084
        %1086 = vdwg.mxu0
        %v1087 = vunpack.c.l.b16 %v760
        %v1088 = vunpack.c.l.b16 %v772
        %v1089 = vpack.c.b16 %v1088, %v1087
        %v1091 = vsel %vm1020, %v1089, 0
        %v1094 = vsel %vm1020, %v894, 0
        %1096 = vmatpush.bf16.xpose.msra.mxu0 0
        %1097 = vmatpush.bf16.xpose.msra.mxu0 0
        %1098 = vmatpush.bf16.xpose.msra.mxu0 0
        %1099 = vmatpush.bf16.xpose.msra.mxu0 0
        %1100 = vmatpush.bf16.xpose.msra.mxu0 0
        %1101 = vmatpush.bf16.xpose.msra.mxu0 0
        %1102 = vmatpush.bf16.xpose.msra.mxu0 0
        %1103 = vmatpush.bf16.xpose.msra.mxu0 %v1094
        %1104 = vmatmul.bf16.gmra.mxu0 %v1091
        %v1105 = vpop.f32.mrf.mxu0
        %v1106 = vadd.f32 0.0, %v1105
        %v1107 = vpop.f32.mrf.mxu0
        %v1108 = vadd.f32 0.0, %v1107
        %1109 = vdwg.mxu0
        %vm1110 = vcmask 64512
        %v1111 = vsel %vm1110, %v1037, -inf
        %1112 = vmax.xlane.f32.xlu0 %v1111
        %v1113 = vpop.xlane.xlu0 %1112
        %v1114 = vsel %vm1110, %v1039, -inf
        %1115 = vmax.xlane.f32.xlu0 %v1114
        %v1116 = vpop.xlane.xlu0 %1115
        %v1117 = vsel %vm1110, %v1060, -inf
        %1118 = vmax.xlane.f32.xlu0 %v1117
        %v1119 = vpop.xlane.xlu0 %1118
        %v1120 = vsel %vm1110, %v1062, -inf
        %1121 = vmax.xlane.f32.xlu0 %v1120
        %v1122 = vpop.xlane.xlu0 %1121
        %v1123 = vsel %vm1110, %v1083, -inf
        %1124 = vmax.xlane.f32.xlu0 %v1123
        %v1125 = vpop.xlane.xlu0 %1124
        %v1126 = vsel %vm1110, %v1085, -inf
        %1127 = vmax.xlane.f32.xlu0 %v1126
        %v1128 = vpop.xlane.xlu0 %1127
        %v1129 = vsel %vm1110, %v1106, -inf
        %1130 = vmax.xlane.f32.xlu0 %v1129
        %v1131 = vpop.xlane.xlu0 %1130
        %v1132 = vsel %vm1110, %v1108, -inf
        %1133 = vmax.xlane.f32.xlu0 %v1132
        %v1134 = vpop.xlane.xlu0 %1133
        %v1135 = vsub.f32 %v1037, %v1113
        %v1136 = vsub.f32 %v1039, %v1116
        %v1137 = vsub.f32 %v1060, %v1119
        %v1138 = vsub.f32 %v1062, %v1122
        %v1139 = vsub.f32 %v1083, %v1125
        %v1140 = vsub.f32 %v1085, %v1128
        %v1141 = vsub.f32 %v1106, %v1131
        %v1142 = vsub.f32 %v1108, %v1134
        %v1143 = vmul.f32 %v1135, 1.442695
        %v1144 = vpow.pop %v1143
        %v1145 = vmul.f32 %v1136, 1.442695
        %v1146 = vpow.pop %v1145
        %v1147 = vmul.f32 %v1137, 1.442695
        %v1148 = vpow.pop %v1147
        %v1149 = vmul.f32 %v1138, 1.442695
        %v1150 = vpow.pop %v1149
        %v1151 = vmul.f32 %v1139, 1.442695
        %v1152 = vpow.pop %v1151
        %v1153 = vmul.f32 %v1140, 1.442695
        %v1154 = vpow.pop %v1153
        %v1155 = vmul.f32 %v1141, 1.442695
        %v1156 = vpow.pop %v1155
        %v1157 = vmul.f32 %v1142, 1.442695
        %v1158 = vpow.pop %v1157
        %v1159 = vsel %vm1110, %v1144, 0.0
        %1160 = vadd.xlane.f32.xlu0 %v1159
        %v1161 = vpop.xlane.xlu0 %1160
        %v1162 = vsel %vm1110, %v1146, 0.0
        %1163 = vadd.xlane.f32.xlu0 %v1162
        %v1164 = vpop.xlane.xlu0 %1163
        %v1165 = vsel %vm1110, %v1148, 0.0
        %1166 = vadd.xlane.f32.xlu0 %v1165
        %v1167 = vpop.xlane.xlu0 %1166
        %v1168 = vsel %vm1110, %v1150, 0.0
        %1169 = vadd.xlane.f32.xlu0 %v1168
        %v1170 = vpop.xlane.xlu0 %1169
        %v1171 = vsel %vm1110, %v1152, 0.0
        %1172 = vadd.xlane.f32.xlu0 %v1171
        %v1173 = vpop.xlane.xlu0 %1172
        %v1174 = vsel %vm1110, %v1154, 0.0
        %1175 = vadd.xlane.f32.xlu0 %v1174
        %v1176 = vpop.xlane.xlu0 %1175
        %v1177 = vsel %vm1110, %v1156, 0.0
        %1178 = vadd.xlane.f32.xlu0 %v1177
        %v1179 = vpop.xlane.xlu0 %1178
        %v1180 = vsel %vm1110, %v1158, 0.0
        %1181 = vadd.xlane.f32.xlu0 %v1180
        %v1182 = vpop.xlane.xlu0 %1181
        %v1183 = vrcp.pop %v1161
        %v1184 = vrcp.pop %v1164
        %v1185 = vrcp.pop %v1167
        %v1186 = vrcp.pop %v1170
        %v1187 = vrcp.pop %v1173
        %v1188 = vrcp.pop %v1176
        %v1189 = vrcp.pop %v1179
        %v1190 = vrcp.pop %v1182
        %v1191 = vmul.f32 %v1144, %v1183
        %v1192 = vmul.f32 %v1146, %v1184
        %v1193 = vmul.f32 %v1148, %v1185
        %v1194 = vmul.f32 %v1150, %v1186
        %v1195 = vmul.f32 %v1152, %v1187
        %v1196 = vmul.f32 %v1154, %v1188
        %v1197 = vmul.f32 %v1156, %v1189
        %v1198 = vmul.f32 %v1158, %v1190
        %v1199 = vpack.c.bf16 %v1191, %v1191
        %v1200 = vpack.c.bf16 %v1192, %v1192
        %v1201 = vpack.c.bf16 %v1193, %v1193
        %v1202 = vpack.c.bf16 %v1194, %v1194
        %v1203 = vpack.c.bf16 %v1195, %v1195
        %v1204 = vpack.c.bf16 %v1196, %v1196
        %v1205 = vpack.c.bf16 %v1197, %v1197
        %v1206 = vpack.c.bf16 %v1198, %v1198
        %v1209 = vunpack.c.l.b16 %v1199
        %v1210 = vunpack.c.l.b16 %v1200
        %v1211 = vpack.c.b16 %v1210, %v1209
        %v1213 = vsel %vm1110, %v1211, 0
        %vm1215 = vcmask 1043456
        %v1217 = vsel %vm1215, %v1007, 0
        %1219 = vmatpush.bf16.msra.mxu0 0
        %1220 = vmatpush.bf16.msra.mxu0 0
        %1221 = vmatpush.bf16.msra.mxu0 0
        %1222 = vmatpush.bf16.msra.mxu0 0
        %1223 = vmatpush.bf16.msra.mxu0 0
        %1224 = vmatpush.bf16.msra.mxu0 0
        %1225 = vmatpush.bf16.msra.mxu0 0
        %1226 = vmatpush.bf16.msra.mxu0 %v1217
        %1227 = vmatmul.bf16.gmra.mxu0 %v1213
        %v1228 = vpop.f32.mrf.mxu0
        %v1229 = vadd.f32 0.0, %v1228
        %v1230 = vpop.f32.mrf.mxu0
        %v1231 = vadd.f32 0.0, %v1230
        %1232 = vdwg.mxu0
        %v1235 = vunpack.c.l.b16 %v1201
        %v1236 = vunpack.c.l.b16 %v1202
        %v1237 = vpack.c.b16 %v1236, %v1235
        %v1239 = vsel %vm1110, %v1237, 0
        %v1242 = vsel %vm1215, %v1010, 0
        %1244 = vmatpush.bf16.msra.mxu0 0
        %1245 = vmatpush.bf16.msra.mxu0 0
        %1246 = vmatpush.bf16.msra.mxu0 0
        %1247 = vmatpush.bf16.msra.mxu0 0
        %1248 = vmatpush.bf16.msra.mxu0 0
        %1249 = vmatpush.bf16.msra.mxu0 0
        %1250 = vmatpush.bf16.msra.mxu0 0
        %1251 = vmatpush.bf16.msra.mxu0 %v1242
        %1252 = vmatmul.bf16.gmra.mxu0 %v1239
        %v1253 = vpop.f32.mrf.mxu0
        %v1254 = vadd.f32 0.0, %v1253
        %v1255 = vpop.f32.mrf.mxu0
        %v1256 = vadd.f32 0.0, %v1255
        %1257 = vdwg.mxu0
        %v1260 = vunpack.c.l.b16 %v1203
        %v1261 = vunpack.c.l.b16 %v1204
        %v1262 = vpack.c.b16 %v1261, %v1260
        %v1264 = vsel %vm1110, %v1262, 0
        %v1267 = vsel %vm1215, %v1013, 0
        %1269 = vmatpush.bf16.msra.mxu0 0
        %1270 = vmatpush.bf16.msra.mxu0 0
        %1271 = vmatpush.bf16.msra.mxu0 0
        %1272 = vmatpush.bf16.msra.mxu0 0
        %1273 = vmatpush.bf16.msra.mxu0 0
        %1274 = vmatpush.bf16.msra.mxu0 0
        %1275 = vmatpush.bf16.msra.mxu0 0
        %1276 = vmatpush.bf16.msra.mxu0 %v1267
        %1277 = vmatmul.bf16.gmra.mxu0 %v1264
        %v1278 = vpop.f32.mrf.mxu0
        %v1279 = vadd.f32 0.0, %v1278
        %v1280 = vpop.f32.mrf.mxu0
        %v1281 = vadd.f32 0.0, %v1280
        %1282 = vdwg.mxu0
        %v1285 = vunpack.c.l.b16 %v1205
        %v1286 = vunpack.c.l.b16 %v1206
        %v1287 = vpack.c.b16 %v1286, %v1285
        %v1289 = vsel %vm1110, %v1287, 0
        %v1292 = vsel %vm1215, %v1016, 0
        %1294 = vmatpush.bf16.msra.mxu0 0
        %1295 = vmatpush.bf16.msra.mxu0 0
        %1296 = vmatpush.bf16.msra.mxu0 0
        %1297 = vmatpush.bf16.msra.mxu0 0
        %1298 = vmatpush.bf16.msra.mxu0 0
        %1299 = vmatpush.bf16.msra.mxu0 0
        %1300 = vmatpush.bf16.msra.mxu0 0
        %1301 = vmatpush.bf16.msra.mxu0 %v1292
        %1302 = vmatmul.bf16.gmra.mxu0 %v1289
        %v1303 = vpop.f32.mrf.mxu0
        %v1304 = vadd.f32 0.0, %v1303
        %v1305 = vpop.f32.mrf.mxu0
        %v1306 = vadd.f32 0.0, %v1305
        %1307 = vdwg.mxu0
        %v1308 = vpack.c.bf16 %v1229, %v1229
        %v1309 = vpack.c.bf16 %v1231, %v1231
        %v1310 = vpack.c.bf16 %v1254, %v1254
        %v1311 = vpack.c.bf16 %v1256, %v1256
        %v1312 = vpack.c.bf16 %v1279, %v1279
        %v1313 = vpack.c.bf16 %v1281, %v1281
        %v1314 = vpack.c.bf16 %v1304, %v1304
        %v1315 = vpack.c.bf16 %v1306, %v1306
        %v1316 = vld [vmem:[#allocation11] sm:$0xf]
        %v1317 = vld [vmem:[#allocation11 + $0x4] sm:$0xf]
        %v1318 = vld [vmem:[#allocation11 + $0x8] sm:$0xf]
        %v1319 = vld [vmem:[#allocation11 + $0xc] sm:$0xf]
        %v1320 = vld [vmem:[#allocation11 + $0x10] sm:$0xf]
        %v1321 = vld [vmem:[#allocation11 + $0x14] sm:$0xf]
        %v1322 = vld [vmem:[#allocation11 + $0x18] sm:$0xf]
        %v1323 = vld [vmem:[#allocation11 + $0x1c] sm:$0xf]
        %v1326 = vunpack.c.l.b16 %v1308
        %v1327 = vunpack.c.l.b16 %v1309
        %v1328 = vpack.c.b16 %v1327, %v1326
        %v1331 = vunpack.c.l.b16 %v1316
        %v1332 = vunpack.c.l.b16 %v1317
        %v1333 = vpack.c.b16 %v1332, %v1331
        %v1336 = vsel %vm1020, %v1328, 0
        %1338 = vmatpush.bf16.msra.mxu0 0
        %1339 = vmatpush.bf16.msra.mxu0 0
        %1340 = vmatpush.bf16.msra.mxu0 0
        %1341 = vmatpush.bf16.msra.mxu0 0
        %1342 = vmatpush.bf16.msra.mxu0 0
        %1343 = vmatpush.bf16.msra.mxu0 0
        %1344 = vmatpush.bf16.msra.mxu0 0
        %1345 = vmatpush.bf16.msra.mxu0 %v1333
        %1346 = vmatmul.bf16.gmra.mxu0 %v1336
        %v1347 = vpop.f32.mrf.mxu0
        %v1348 = vadd.f32 0.0, %v1347
        %v1349 = vpop.f32.mrf.mxu0
        %v1350 = vadd.f32 0.0, %v1349
        %1351 = vdwg.mxu0
        %v1354 = vunpack.c.l.b16 %v1310
        %v1355 = vunpack.c.l.b16 %v1311
        %v1356 = vpack.c.b16 %v1355, %v1354
        %v1359 = vunpack.c.l.b16 %v1318
        %v1360 = vunpack.c.l.b16 %v1319
        %v1361 = vpack.c.b16 %v1360, %v1359
        %v1364 = vsel %vm1020, %v1356, 0
        %1366 = vmatpush.bf16.msra.mxu0 0
        %1367 = vmatpush.bf16.msra.mxu0 0
        %1368 = vmatpush.bf16.msra.mxu0 0
        %1369 = vmatpush.bf16.msra.mxu0 0
        %1370 = vmatpush.bf16.msra.mxu0 0
        %1371 = vmatpush.bf16.msra.mxu0 0
        %1372 = vmatpush.bf16.msra.mxu0 0
        %1373 = vmatpush.bf16.msra.mxu0 %v1361
        %1374 = vmatmul.bf16.gmra.mxu0 %v1364
        %v1375 = vpop.f32.mrf.mxu0
        %v1376 = vadd.f32 0.0, %v1375
        %v1377 = vpop.f32.mrf.mxu0
        %v1378 = vadd.f32 0.0, %v1377
        %1379 = vdwg.mxu0
        %v1382 = vunpack.c.l.b16 %v1312
        %v1383 = vunpack.c.l.b16 %v1313
        %v1384 = vpack.c.b16 %v1383, %v1382
        %v1387 = vunpack.c.l.b16 %v1320
        %v1388 = vunpack.c.l.b16 %v1321
        %v1389 = vpack.c.b16 %v1388, %v1387
        %v1392 = vsel %vm1020, %v1384, 0
        %1394 = vmatpush.bf16.msra.mxu0 0
        %1395 = vmatpush.bf16.msra.mxu0 0
        %1396 = vmatpush.bf16.msra.mxu0 0
        %1397 = vmatpush.bf16.msra.mxu0 0
        %1398 = vmatpush.bf16.msra.mxu0 0
        %1399 = vmatpush.bf16.msra.mxu0 0
        %1400 = vmatpush.bf16.msra.mxu0 0
        %1401 = vmatpush.bf16.msra.mxu0 %v1389
        %1402 = vmatmul.bf16.gmra.mxu0 %v1392
        %v1403 = vpop.f32.mrf.mxu0
        %v1404 = vadd.f32 0.0, %v1403
        %v1405 = vpop.f32.mrf.mxu0
        %v1406 = vadd.f32 0.0, %v1405
        %1407 = vdwg.mxu0
        %v1410 = vunpack.c.l.b16 %v1314
        %v1411 = vunpack.c.l.b16 %v1315
        %v1412 = vpack.c.b16 %v1411, %v1410
        %v1415 = vunpack.c.l.b16 %v1322
        %v1416 = vunpack.c.l.b16 %v1323
        %v1417 = vpack.c.b16 %v1416, %v1415
        %v1420 = vsel %vm1020, %v1412, 0
        %1422 = vmatpush.bf16.msra.mxu0 0
        %1423 = vmatpush.bf16.msra.mxu0 0
        %1424 = vmatpush.bf16.msra.mxu0 0
        %1425 = vmatpush.bf16.msra.mxu0 0
        %1426 = vmatpush.bf16.msra.mxu0 0
        %1427 = vmatpush.bf16.msra.mxu0 0
        %1428 = vmatpush.bf16.msra.mxu0 0
        %1429 = vmatpush.bf16.msra.mxu0 %v1417
        %1430 = vmatmul.bf16.gmra.mxu0 %v1420
        %v1431 = vpop.f32.mrf.mxu0
        %v1432 = vadd.f32 0.0, %v1431
        %v1433 = vpop.f32.mrf.mxu0
        %v1434 = vadd.f32 0.0, %v1433
        %1435 = vdwg.mxu0
        %v1436 = vsel %vm449, %v1348, 0.0
        %v1437 = vsel %vm449, %v1376, 0.0
        %v1438 = vadd.f32 %v1436, %v1437
        %v1439 = vsel %vm449, %v1404, 0.0
        %v1440 = vadd.f32 %v1438, %v1439
        %v1441 = vsel %vm449, %v1432, 0.0
        %v1442 = vadd.f32 %v1440, %v1441
        %v1443 = vsel %vm449, %v1350, 0.0
        %v1444 = vsel %vm449, %v1378, 0.0
        %v1445 = vadd.f32 %v1443, %v1444
        %v1446 = vsel %vm449, %v1406, 0.0
        %v1447 = vadd.f32 %v1445, %v1446
        %v1448 = vsel %vm449, %v1434, 0.0
        %v1449 = vadd.f32 %v1447, %v1448
        %v1450 = vld [vmem:[%s6] sm:$0x1]
        %v1452 = vperm.slane %v1450, 0
        %v1454 = vadd.f32 %v1442, %v1452
        %v1455 = vadd.f32 %v1449, %v1452
        %1456 = vst.msk [vmem:[%s421] sm:$0xff] %vm449, %v1454
        %1457 = vst.msk [vmem:[%s421 + $0x8] sm:$0xff] %vm449, %v1455
        %s1458 = sand.u32 %s210, 1
        %s1459 = scalar_lea.sflag [#allocation4], %s1458
        %s1460 = sand.u32 %s210, 1
        %s1461 = smul.addr %s1460, 16
        %s1462 = scalar_lea.vmem [#allocation13], %s1461
        // Predicated region
        $region73: #{tpu_custom_call.1} parent=47 // pred_check
          %p1463 = pneg %p220
        $region74: #{tpu_custom_call.1} parent=47 // pred_check_branch
          %1465 = sbr.rel (%p1463) target = $region76
        $region75: #{tpu_custom_call.1} parent=47 // pred_region
          %s1466 = smul.u32 2, %s34
          %1468 = vsyncadd %s1459, 0
          %s1469 = smul.addr %s33, 2
          %s1470 = sadd.s32 %s1466, %s1469
          %s1471 = smul.addr %s1470, 8
          %s1472 = scalar_lea.hbm %s7, %s1471
          %s1473 = sshll.u32 %s1462, 4
          %s1474 = int_to_ptr.vmem [resolvable:$true] %s1473
          %s1475 = sshll.u32 %s1472, 4
          %s1476 = int_to_ptr.hbm [resolvable:$true] %s1475
          %1481 = dma.vmem_to_hbm [thread:$0]  %s1474, 256, %s1476, %s1459, 128, 128, 8
        $region76: #{tpu_custom_call.1} parent=47 // pred_fallthru
          _
      $region48: #{tpu_custom_call.1} parent=5 // pred_fallthru
        _
      %p1482 = scmp.le.s32.totalorder 2, %s24
      // Predicated region
      $region77: #{tpu_custom_call.1} parent=5 // pred_check
        %p1483 = pneg %p1482
      $region78: #{tpu_custom_call.1} parent=5 // pred_check_branch
        %1485 = sbr.rel (%p1483) target = $region80
      $region79: #{tpu_custom_call.1} parent=5 // pred_region
        %s1486 = ssub.s32 %s24, 2
        // Predicated region
        $region81: #{tpu_custom_call.1} parent=79 // pred_check
          %p1487 = pneg %p226
        $region82: #{tpu_custom_call.1} parent=79 // pred_check_branch
          %1489 = sbr.rel (%p1487) target = $region84
        $region83: #{tpu_custom_call.1} parent=79 // pred_region
          %s1490 = sand.u32 %s211, 1
          %s1491 = scalar_lea.sflag [#allocation4], %s1490
          %s1492 = sand.u32 %s211, 1
          %s1493 = smul.addr %s1492, 16
          %s1494 = scalar_lea.vmem [#allocation13], %s1493
          %1496 = dma.done %s1491, 256
        $region84: #{tpu_custom_call.1} parent=79 // pred_fallthru
          _
      $region80: #{tpu_custom_call.1} parent=5 // pred_fallthru
        _
    $region6: #{tpu_custom_call.1} parent=1 // loop_footer
      %s28 = sadd.s32 1, %s24
    $region7: #{tpu_custom_call.1} parent=1 // loop_footer_branch
      %23 = sbr.rel target = $region3
    $region8: #{tpu_custom_call.1} parent=1 // loop_exit
      _
    %1497 = vsyncpa [#allocation3], 1
    %s1498 = scalar_lea.sflag [#allocation3], 1
    %1499 = vsyncpa %s1498, 1
    %1500 = vsyncpa [#allocation6], 1
    %s1501 = scalar_lea.sflag [#allocation6], 1
    %1502 = vsyncpa %s1501, 1
    %1503 = vsyncpa [#allocation9], 1
    %1504 = vsyncpa [#allocation12], 1
    %1505 = vsyncpa [#allocation4], 1
    %s1506 = scalar_lea.sflag [#allocation4], 1
    %1507 = vsyncpa %s1506, 1

</llo_original>
